<compile_context>
chip_gen: v7x
topology: tpu7x:2x2x1
jax: 0.10.0
libtpu: 0.0.40
codegen_flags: <defaults>
</compile_context>

<pallas_src>
import functools
import math

import jax
import jax.numpy as jnp
from jax.experimental import pallas as pl
from jax.experimental.pallas import tpu as pltpu

_MiB = 1024 * 1024


def _masked_softmax_kernel(x_ref, m_ref, o_ref, *, scale, compute_fp32):
    x = x_ref[...]
    if compute_fp32:
        x = x.astype(jnp.float32)
    if scale != 1.0:
        x = x * jnp.asarray(scale, dtype=x.dtype)
    # masked_fill_(mask, -10000.0); mask block broadcasts over any size-1 dims.
    m = m_ref[...]
    if m.dtype != jnp.bool_:
        m = m != 0
    x = jnp.where(m, jnp.asarray(-10000.0, dtype=x.dtype), x)
    # Numerically-stable softmax along the last (lane) axis.
    x_max = jnp.max(x, axis=-1, keepdims=True)
    e = jnp.exp(x - x_max)
    denom = jnp.sum(e, axis=-1, keepdims=True)
    # Approx reciprocal runs on the otherwise-idle EUP slot (done in f32 for all paths).
    inv = pl.reciprocal(denom.astype(jnp.float32), approx=True).astype(e.dtype)
    o_ref[...] = (e * inv).astype(o_ref.dtype)


def _choose_q_tile(Q, K, x_itemsize, mask_rows_tiled, vmem_budget_bytes):
    """Largest sublane-aligned Q tile whose working set fits the VMEM budget."""
    # Per Q-row bytes: double-buffered x + out blocks, the mask block when it is tiled
    # over Q (1 byte/elem, double-buffered), and ~3 fp32 in-kernel temporaries.
    per_row = K * (4 * x_itemsize + (2 if mask_rows_tiled else 0) + 12)
    max_rows = int(vmem_budget_bytes // max(per_row, 1))
    if Q <= max(max_rows, 8):
        return Q  # full-Q block is always legal, even when Q < 8
    for align in (32, 16, 8):
        if max_rows >= align:
            return (max_rows // align) * align
    # K is so large that even 8 rows exceed the budget; use the minimum legal aligned
    # tile and let the vmem_limit headroom absorb the overshoot.
    # TODO(synk): add a K-tiled two-pass / online-softmax path for very long rows.
    return 8


def masked_softmax(
    x: jax.Array,
    mask: jax.Array,
    *,
    scale: float = 1.0,
    softmax_in_fp32: bool = True,
    vmem_budget_bytes: int | None = None,
) -> jax.Array:
    """Pallas implementation of MaskedSoftmaxTorch.forward."""
    orig_shape = x.shape
    orig_dtype = x.dtype
    compute_fp32 = softmax_in_fp32 and x.dtype != jnp.float32

    n = x.ndim
    if n < 2:
        x = x.reshape((1,) * (2 - n) + x.shape)
        n = 2

    # Normalize mask rank: strip leading broadcast dims if over-ranked, then left-pad.
    m = mask
    while m.ndim > n and m.shape[0] == 1:
        m = m.reshape(m.shape[1:])
    if m.ndim > n:
        raise ValueError(f"mask shape {mask.shape} not broadcastable to {orig_shape}")
    if m.ndim < n:
        m = m.reshape((1,) * (n - m.ndim) + m.shape)
    for xd, md in zip(x.shape, m.shape):
        if md not in (1, xd):
            raise ValueError(f"mask shape {mask.shape} not broadcastable to {orig_shape}")

    # Normalize to 4-D (B, H, Q, K) without materializing the mask broadcast.
    if n < 4:
        x4 = x.reshape((1,) * (4 - n) + x.shape)
        m4 = m.reshape((1,) * (4 - n) + m.shape)
    elif n == 4:
        x4, m4 = x, m
    else:
        lead_x = x.shape[: n - 3]
        lead_m = m.shape[: n - 3]
        B0 = math.prod(lead_x)
        if all(d == 1 for d in lead_m):
            m4 = m.reshape((1,) + m.shape[n - 3:])
        elif lead_m == lead_x:
            m4 = m.reshape((B0,) + m.shape[n - 3:])
        else:
            # Mixed broadcast inside the collapsed leading dims: materialize only those.
            m4 = jnp.broadcast_to(m, lead_x + m.shape[n - 3:]).reshape(
                (B0,) + m.shape[n - 3:]
            )
        x4 = x.reshape((B0,) + x.shape[n - 3:])

    B, H, Q, K = x4.shape
    mB, mH, mQ, mK = m4.shape

    # VMEM sizing from the actual chip (v7x: 64 MiB/TC; v5e/v6e: 128 MiB).
    try:
        vmem_cap = int(pltpu.get_tpu_info().vmem_capacity_bytes)
    except Exception:  # conservative fallback if the query is unavailable
        vmem_cap = 64 * _MiB
    if vmem_budget_bytes is None:
        vmem_budget_bytes = min(int(0.4 * vmem_cap), 32 * _MiB)
    vmem_limit_bytes = int(min(vmem_cap - 12 * _MiB, vmem_budget_bytes + 24 * _MiB))

    x_itemsize = jnp.dtype(x4.dtype).itemsize
    tq = _choose_q_tile(Q, K, x_itemsize, mQ == Q, vmem_budget_bytes)
    # Ensure >= 2 steps on the "parallel" axes so v7x's second TensorCore is used.
    if B * pl.cdiv(Q, tq) < 2 and Q >= 16:
        tq = min(tq, ((pl.cdiv(Q, 2) + 7) // 8) * 8)
    q_blocks = pl.cdiv(Q, tq)

    tq_m = tq if mQ == Q else 1
    tk_m = K if mK == K else 1

    # Grid: (B, Q-blocks, H) with the broadcast head axis innermost ("arbitrary") so the
    # mask block index is unchanged across consecutive steps and its re-DMA is skipped.
    def x_map(b, q, h):
        return (b, h, q, 0)

    def m_map(b, q, h):
        return (b if mB == B else 0, h if mH == H else 0, q if mQ == Q else 0, 0)

    kernel = functools.partial(
        _masked_softmax_kernel, scale=float(scale), compute_fp32=compute_fp32
    )

    total = B * H * Q * K
    mask_bytes = mB * mH * mQ * mK * jnp.dtype(m4.dtype).itemsize
    cost = pl.CostEstimate(
        flops=5 * total,
        transcendentals=total,
        bytes_accessed=2 * total * jnp.dtype(orig_dtype).itemsize + mask_bytes,
    )

    out4 = pl.pallas_call(
        kernel,
        out_shape=jax.ShapeDtypeStruct((B, H, Q, K), orig_dtype),
        grid_spec=pltpu.PrefetchScalarGridSpec(
            num_scalar_prefetch=0,
            grid=(B, q_blocks, H),
            in_specs=[
                pl.BlockSpec((1, 1, tq, K), x_map),
                pl.BlockSpec((1, 1, tq_m, tk_m), m_map),
            ],
            out_specs=pl.BlockSpec((1, 1, tq, K), x_map),
        ),
        compiler_params=pltpu.CompilerParams(
            dimension_semantics=("parallel", "parallel", "arbitrary"),
            vmem_limit_bytes=vmem_limit_bytes,
        ),
        cost_estimate=cost,
    )(x4, m4)

    return out4.reshape(orig_shape)


def masked_softmax_ref(x, mask, *, scale=1.0, softmax_in_fp32=True):
    """Pure-JAX reference mirroring the PyTorch semantics."""
    input_dtype = None
    if softmax_in_fp32 and x.dtype != jnp.float32:
        input_dtype = x.dtype
        x = x.astype(jnp.float32)
    if scale != 1.0:
        x = x * scale
    x = jnp.where(jnp.broadcast_to(mask, x.shape), jnp.asarray(-10000.0, x.dtype), x)
    probs = jax.nn.softmax(x, axis=-1)
    if softmax_in_fp32 and input_dtype is not None:
        probs = probs.astype(input_dtype)
    return probs


if __name__ == "__main__":
    key = jax.random.PRNGKey(0)
    k_x, k_m = jax.random.split(key)

    # Small attention-score-like shapes: batch=2, heads=4, q=16, k=128 (lane-dense K).
    B, H, Q, K = 2, 4, 16, 128
    scale = 0.125            # e.g. 1/sqrt(head_dim=64)
    softmax_in_fp32 = True

    x = jax.random.normal(k_x, (B, H, Q, K), dtype=jnp.bfloat16)
    # Boolean mask broadcastable over heads: [B, 1, Q, K], True = masked out.
    mask = jax.random.uniform(k_m, (B, 1, Q, K)) < 0.3

    out = masked_softmax(x, mask, scale=scale, softmax_in_fp32=softmax_in_fp32)
    out = jax.block_until_ready(out)

    ref = masked_softmax_ref(x, mask, scale=scale, softmax_in_fp32=softmax_in_fp32)

    assert out.shape == x.shape
    assert out.dtype == x.dtype
    err = jnp.max(jnp.abs(out.astype(jnp.float32) - ref.astype(jnp.float32)))
    assert float(err) < 1e-2, f"max abs err too large: {err}"

    print("KERNEL_OK")
</pallas_src>

<mosaic_0001>
module attributes {stable_mosaic.version = 11 : i64} {
  func.func @_masked_softmax_kernel(%arg0: i32, %arg1: i32, %arg2: i32, %arg3: memref<1x1x16x128xbf16, #tpu.memory_space<vmem>>, %arg4: memref<1x1x16x128xi32, #tpu.memory_space<vmem>>, %arg5: memref<1x1x16x128xbf16, #tpu.memory_space<vmem>>) attributes {dimension_semantics = [#tpu.dimension_semantics<parallel>, #tpu.dimension_semantics<parallel>, #tpu.dimension_semantics<arbitrary>], iteration_bounds = array<i64: 2, 1, 4>, scalar_prefetch = 0 : i64, scratch_operands = 0 : i64, tpu.core_type = #tpu.core_type<tc>, window_params = [{transform_indices = @transform_0, window_bounds = array<i64: 1, 1, 16, 128>}, {transform_indices = @transform_1, window_bounds = array<i64: 1, 1, 16, 128>}, {transform_indices = @transform_2, window_bounds = array<i64: 1, 1, 16, 128>}]} {
    %c0 = arith.constant 0 : index
    %c0_0 = arith.constant 0 : index
    %c0_1 = arith.constant 0 : index
    %c0_2 = arith.constant 0 : index
    %0 = vector.load %arg3[%c0, %c0_0, %c0_1, %c0_2] : memref<1x1x16x128xbf16, #tpu.memory_space<vmem>>, vector<1x1x16x128xbf16>
    %1 = arith.extf %0 : vector<1x1x16x128xbf16> to vector<1x1x16x128xf32>
    %cst = arith.constant 1.250000e-01 : f32
    %2 = vector.broadcast %cst : f32 to vector<1x1x16x128xf32>
    %3 = arith.mulf %1, %2 : vector<1x1x16x128xf32>
    %c0_3 = arith.constant 0 : index
    %c0_4 = arith.constant 0 : index
    %c0_5 = arith.constant 0 : index
    %c0_6 = arith.constant 0 : index
    %4 = vector.load %arg4[%c0_3, %c0_4, %c0_5, %c0_6] : memref<1x1x16x128xi32, #tpu.memory_space<vmem>>, vector<1x1x16x128xi32>
    %cst_7 = arith.constant dense<0> : vector<1x1x16x128xi32>
    %5 = arith.cmpi ne, %4, %cst_7 : vector<1x1x16x128xi32>
    %cst_8 = arith.constant -1.000000e+04 : f32
    %6 = vector.broadcast %cst_8 : f32 to vector<1x1x16x128xf32>
    %7 = arith.select %5, %6, %3 : vector<1x1x16x128xi1>, vector<1x1x16x128xf32>
    %cst_9 = arith.constant dense<0xFF800000> : vector<1x1x16xf32>
    %8 = vector.multi_reduction <maximumf>, %7, %cst_9 [3] : vector<1x1x16x128xf32> to vector<1x1x16xf32>
    %9 = vector.shape_cast %8 : vector<1x1x16xf32> to vector<1x1x16x1xf32>
    %10 = vector.broadcast %9 : vector<1x1x16x1xf32> to vector<1x1x16x128xf32>
    %11 = arith.subf %7, %10 : vector<1x1x16x128xf32>
    %12 = math.exp %11 : vector<1x1x16x128xf32>
    %cst_10 = arith.constant dense<0.000000e+00> : vector<1x1x16xf32>
    %13 = vector.multi_reduction <add>, %12, %cst_10 [3] : vector<1x1x16x128xf32> to vector<1x1x16xf32>
    %14 = vector.shape_cast %13 : vector<1x1x16xf32> to vector<1x1x16x1xf32>
    %15 = tpu.reciprocal %14 {approx = true} : vector<1x1x16x1xf32> -> vector<1x1x16x1xf32>
    %16 = vector.broadcast %15 : vector<1x1x16x1xf32> to vector<1x1x16x128xf32>
    %17 = arith.mulf %12, %16 : vector<1x1x16x128xf32>
    %18 = arith.truncf %17 : vector<1x1x16x128xf32> to vector<1x1x16x128xbf16>
    %c0_11 = arith.constant 0 : index
    %c0_12 = arith.constant 0 : index
    %c0_13 = arith.constant 0 : index
    %c0_14 = arith.constant 0 : index
    %19 = vector.load %arg5[%c0_11, %c0_12, %c0_13, %c0_14] : memref<1x1x16x128xbf16, #tpu.memory_space<vmem>>, vector<1x1x16x128xbf16>
    tpu.vector_store %arg5[%c0_11, %c0_12, %c0_13, %c0_14], %18 {strides = array<i32>} : memref<1x1x16x128xbf16, #tpu.memory_space<vmem>>, vector<1x1x16x128xbf16>,
    return
  }
  func.func @transform_0(%arg0: i32, %arg1: i32, %arg2: i32) -> (i32, i32, i32, i32) {
    %c0_i32 = arith.constant 0 : i32
    %c0_i32_0 = arith.constant 0 : i32
    return %arg0, %arg2, %arg1, %c0_i32 : i32, i32, i32, i32
  }
  func.func @transform_1(%arg0: i32, %arg1: i32, %arg2: i32) -> (i32, i32, i32, i32) {
    %c0_i32 = arith.constant 0 : i32
    %c0_i32_0 = arith.constant 0 : i32
    %c0_i32_1 = arith.constant 0 : i32
    return %arg0, %c0_i32, %arg1, %c0_i32_0 : i32, i32, i32, i32
  }
  func.func @transform_2(%arg0: i32, %arg1: i32, %arg2: i32) -> (i32, i32, i32, i32) {
    %c0_i32 = arith.constant 0 : i32
    %c0_i32_0 = arith.constant 0 : i32
    return %arg0, %arg2, %arg1, %c0_i32 : i32, i32, i32, i32
  }
}

</mosaic_0001>

<llo_original>
// kernel: tpu_custom_call.1
$region0: #{tpu_custom_call.1}
  #allocation0 [shape = 'u32[]', space=smem, size = 0x4, offset = 0x4, fixed_abs, tag = 'smem constant byte address 0x4 - core index']
  #allocation1 [shape = 'u32[144,128]{1,0:T(1,128)}', space=vmem, size = 0x12000, scoped, tag = 'internal scratch']
  %s0 = inlined_call_operand.hbm [shape: bf16[2,4,16,128], index: 0, kind: input, shape index: {}]
  %s1 = inlined_call_operand.vmem [shape: s32[2,1,16,128], index: 1, kind: input, shape index: {}]
  %s2 = inlined_call_operand.hbm [shape: bf16[2,4,16,128], index: 2, kind: output, shape index: {}]
  %s3 = sld [smem:[#allocation0]]
  $region45: #{tpu_custom_call.1} parent=0
    _
  %s5 = ssub.s32 1, %s3
  %s6 = scalar_select 0, %s5, %s3
  $region1: #{tpu_custom_call.1} parent=0
    #allocation2 [shape = 'u8[8192]{0}', space=vmem, size = 0x2000, scoped, tag = 'input window, operand 0']
    #allocation3 [shape = 's32[2]{0}', space=sflag, size = 0x8, scoped, tag = 'scoped memory for tpu_custom_call.1']
    #allocation4 [shape = 's32[2]{0}', space=sflag, size = 0x8, scoped, tag = 'scoped memory for tpu_custom_call.1']
    #allocation5 [shape = 'u8[8192]{0}', space=vmem, size = 0x2000, scoped, tag = 'output window, operand 0']
    %7 = vsyncpa [#allocation3], 0
    %s8 = scalar_lea.sflag [#allocation3], 1
    %9 = vsyncpa %s8, 0
    %10 = vsyncpa [#allocation4], 0
    %s11 = scalar_lea.sflag [#allocation4], 1
    %12 = vsyncpa %s11, 0
    loop: start=0, step=1, limit=10
    $region2: #{tpu_custom_call.1} parent=1 // loop_pre_header
      _
    $region3: #{tpu_custom_call.1} parent=1 // loop_header
      %s14 = sphi 0, %s18
      %p15 = scmp.ge.s32.totalorder %s14, 10
      %s21 = sphi 0, %s40
      %s22 = sphi 0, %s36
      %s23 = sphi 0, %s32
      %s24 = sphi 0, %s21
      %s25 = sphi 0, %s22
      %s26 = sphi 0, %s23
      %s27 = sphi 0, %s24
      %s28 = sphi 0, %s25
      %s29 = sphi 0, %s26
      %s47 = sphi 0, %s49
      %s50 = sphi 0, %s47
      %s51 = sphi 0, %s50
      %s67 = sphi 0, %s51
      %s75 = sphi 0, %s77
      %s78 = sphi 0, %s75
      %s79 = sphi 0, %s78
      %s95 = sphi 0, %s79
      %s105 = sphi 0, %s107
      %s108 = sphi 0, %s105
      %s109 = sphi 0, %s108
      %s125 = sphi 0, %s109
    $region4: #{tpu_custom_call.1} parent=1 // loop_header_branch
      %17 = sbr.rel (%p15) target = $region8
    $region5: #{tpu_custom_call.1} parent=1 // loop_body
      %s19 = ssub.s32 %s14, 1
      %s20 = ssub.s32 %s14, 2
      %s30 = sadd.s32 1, %s23
      %p31 = scmp.ge.s32.totalorder %s30, 4
      %s32 = scalar_select %p31, 0, %s30
      %s33 = sadd.s32 1, %s22
      %s34 = scalar_select %p31, %s33, %s22
      %p35 = scmp.ge.s32.totalorder %s34, 1
      %s36 = scalar_select %p35, 0, %s34
      %s37 = sadd.s32 1, %s21
      %s38 = scalar_select %p35, %s37, %s21
      %p39 = scmp.ge.s32.totalorder %s38, 2
      %s40 = scalar_select %p39, 0, %s38
      %s41 = ssub.s32 %s21, %s40
      %s42 = ssub.s32 %s23, %s32
      %s43 = sor.u32 %s41, %s42
      %s44 = ssub.s32 %s22, %s36
      %s45 = sor.u32 %s43, %s44
      %p46 = scmp.eq.s32.totalorder %s45, 0
      %s48 = sadd.s32 %s47, 1
      %s49 = scalar_select %p46, %s47, %s48
      %p52 = pneg %p46
      %p53 = scmp.eq.s32.totalorder %s14, 7
      %p54 = por %p52, %p53
      %p55 = scmp.ne.s32.totalorder %s47, %s50
      %p56 = scmp.eq.s32.totalorder %s14, 0
      %p57 = por %p55, %p56
      %p58 = scmp.ne.s32.totalorder %s47, %s50
      %p59 = scmp.eq.s32.totalorder %s19, 7
      %p60 = por %p58, %p59
      %p61 = scmp.ne.s32.totalorder %s50, %s51
      %p62 = scmp.eq.s32.totalorder %s19, 0
      %p63 = por %p61, %p62
      %p64 = scmp.ne.s32.totalorder %s50, %s51
      %p65 = scmp.eq.s32.totalorder %s20, 7
      %p66 = por %p64, %p65
      %p68 = scmp.ne.s32.totalorder %s51, %s67
      %p69 = scmp.eq.s32.totalorder %s20, 0
      %p70 = por %p68, %p69
      %s71 = ssub.s32 %s21, %s40
      %s72 = ssub.s32 %s22, %s36
      %s73 = sor.u32 %s71, %s72
      %p74 = scmp.eq.s32.totalorder %s73, 0
      %s76 = sadd.s32 %s75, 1
      %s77 = scalar_select %p74, %s75, %s76
      %p80 = pneg %p74
      %p81 = scmp.eq.s32.totalorder %s14, 7
      %p82 = por %p80, %p81
      %p83 = scmp.ne.s32.totalorder %s75, %s78
      %p84 = scmp.eq.s32.totalorder %s14, 0
      %p85 = por %p83, %p84
      %p86 = scmp.ne.s32.totalorder %s75, %s78
      %p87 = scmp.eq.s32.totalorder %s19, 7
      %p88 = por %p86, %p87
      %p89 = scmp.ne.s32.totalorder %s78, %s79
      %p90 = scmp.eq.s32.totalorder %s19, 0
      %p91 = por %p89, %p90
      %p92 = scmp.ne.s32.totalorder %s78, %s79
      %p93 = scmp.eq.s32.totalorder %s20, 7
      %p94 = por %p92, %p93
      %p96 = scmp.ne.s32.totalorder %s79, %s95
      %p97 = scmp.eq.s32.totalorder %s20, 0
      %p98 = por %p96, %p97
      %s99 = ssub.s32 %s21, %s40
      %s100 = ssub.s32 %s23, %s32
      %s101 = sor.u32 %s99, %s100
      %s102 = ssub.s32 %s22, %s36
      %s103 = sor.u32 %s101, %s102
      %p104 = scmp.eq.s32.totalorder %s103, 0
      %s106 = sadd.s32 %s105, 1
      %s107 = scalar_select %p104, %s105, %s106
      %p110 = pneg %p104
      %p111 = scmp.eq.s32.totalorder %s14, 7
      %p112 = por %p110, %p111
      %p113 = scmp.ne.s32.totalorder %s105, %s108
      %p114 = scmp.eq.s32.totalorder %s14, 0
      %p115 = por %p113, %p114
      %p116 = scmp.ne.s32.totalorder %s105, %s108
      %p117 = scmp.eq.s32.totalorder %s19, 7
      %p118 = por %p116, %p117
      %p119 = scmp.ne.s32.totalorder %s108, %s109
      %p120 = scmp.eq.s32.totalorder %s19, 0
      %p121 = por %p119, %p120
      %p122 = scmp.ne.s32.totalorder %s108, %s109
      %p123 = scmp.eq.s32.totalorder %s20, 7
      %p124 = por %p122, %p123
      %p126 = scmp.ne.s32.totalorder %s109, %s125
      %p127 = scmp.eq.s32.totalorder %s20, 0
      %p128 = por %p126, %p127
      %p129 = scmp.le.s32.totalorder 1, %s14
      %p130 = scmp.lt.s32.totalorder %s14, 9
      %p131 = pnand %p129, %p130
      %p132 = pneg %p131
      // Predicated region
      $region9: #{tpu_custom_call.1} parent=5 // pred_check
        _
      $region10: #{tpu_custom_call.1} parent=5 // pred_check_branch
        %134 = sbr.rel (%p131) target = $region12
      $region11: #{tpu_custom_call.1} parent=5 // pred_region
        %s135 = ssub.s32 %s14, 1
      $region12: #{tpu_custom_call.1} parent=5 // pred_fallthru
        _
      %p136 = scmp.lt.s32.totalorder %s14, 8
      // Predicated region
      $region13: #{tpu_custom_call.1} parent=5 // pred_check
        %p137 = pneg %p136
      $region14: #{tpu_custom_call.1} parent=5 // pred_check_branch
        %139 = sbr.rel (%p137) target = $region16
      $region15: #{tpu_custom_call.1} parent=5 // pred_region
        // Predicated region
        $region17: #{tpu_custom_call.1} parent=15 // pred_check
          %p140 = pneg %p57
        $region18: #{tpu_custom_call.1} parent=15 // pred_check_branch
          %142 = sbr.rel (%p140) target = $region20
        $region19: #{tpu_custom_call.1} parent=15 // pred_region
          %s143 = sand.u32 %s47, 1
          %s144 = scalar_lea.sflag [#allocation3], %s143
          %s145 = sand.u32 %s47, 1
          %s146 = smul.addr %s145, 8
          %s147 = scalar_lea.vmem [#allocation2], %s146
          %s148 = smul.u32 2, %s22
          %s150 = ssub.s32 128, 128
          %151 = vsyncadd %s144, %s150
          %s152 = smul.addr %s23, 2
          %s153 = sadd.s32 %s148, %s152
          %s154 = smul.addr %s21, 8
          %s155 = sadd.s32 %s153, %s154
          %s156 = smul.addr %s155, 64
          %s157 = scalar_lea.hbm %s0, %s156
          %s158 = sshll.u32 %s147, 4
          %s159 = int_to_ptr.vmem [resolvable:$true] %s158
          %164 = dma.hbm_to_vmem [thread:$0]  %s157, 128, %s159, %s144, 64, 64, 4
        $region20: #{tpu_custom_call.1} parent=15 // pred_fallthru
          _
        // Predicated region
        $region21: #{tpu_custom_call.1} parent=15 // pred_check
          %p165 = pneg %p85
        $region22: #{tpu_custom_call.1} parent=15 // pred_check_branch
          %167 = sbr.rel (%p165) target = $region24
        $region23: #{tpu_custom_call.1} parent=15 // pred_region
          %s168 = smul.u32 2, %s22
          %p169 = scmp.lt.s32.totalorder %s21, 1
          %s170 = scalar_select %p169, %s21, 1
          %p171 = scmp.lt.s32.totalorder %s168, 1
          %s172 = scalar_select %p171, %s168, 1
          %s173 = smul.addr %s170, 2
          %s174 = sadd.s32 %s172, %s173
          %s175 = smul.addr %s174, 8
          %s176 = scalar_lea.vmem %s1, %s175
          %s177 = smul.u32 2, %s22
        $region24: #{tpu_custom_call.1} parent=15 // pred_fallthru
          _
      $region16: #{tpu_custom_call.1} parent=5 // pred_fallthru
        _
      %p178 = scmp.le.s32.totalorder 1, %s14
      %p179 = scmp.lt.s32.totalorder %s14, 9
      %p180 = pnand %p178, %p179
      %p181 = pneg %p180
      // Predicated region
      $region25: #{tpu_custom_call.1} parent=5 // pred_check
        _
      $region26: #{tpu_custom_call.1} parent=5 // pred_check_branch
        %183 = sbr.rel (%p180) target = $region28
      $region27: #{tpu_custom_call.1} parent=5 // pred_region
        %s184 = ssub.s32 %s14, 1
        %s185 = sand.u32 %s50, 1
        %s186 = scalar_lea.sflag [#allocation3], %s185
        %s187 = sand.u32 %s50, 1
        %s188 = smul.addr %s187, 8
        %s189 = scalar_lea.vmem [#allocation2], %s188
        // Predicated region
        $region29: #{tpu_custom_call.1} parent=27 // pred_check
          %p190 = pneg %p63
        $region30: #{tpu_custom_call.1} parent=27 // pred_check_branch
          %192 = sbr.rel (%p190) target = $region32
        $region31: #{tpu_custom_call.1} parent=27 // pred_region
          %193 = dma.done %s186, 128
        $region32: #{tpu_custom_call.1} parent=27 // pred_fallthru
          _
        %s194 = sand.u32 %s50, 1
        %s195 = scalar_lea.sflag [#allocation3], %s194
        %s196 = sand.u32 %s50, 1
        %s197 = smul.addr %s196, 8
        %s198 = scalar_lea.vmem [#allocation2], %s197
        %p199 = pneg %p63
        %p200 = pneg %p60
        %s201 = smul.u32 2, %s25
        %p202 = scmp.lt.s32.totalorder %s24, 1
        %s203 = scalar_select %p202, %s24, 1
        %p204 = scmp.lt.s32.totalorder %s201, 1
        %s205 = scalar_select %p204, %s201, 1
        %s206 = smul.addr %s203, 2
        %s207 = sadd.s32 %s205, %s206
        %s208 = smul.addr %s207, 8
        %s209 = scalar_lea.vmem %s1, %s208
        %p210 = pneg %p91
        %p211 = pneg %p88
        %p212 = pneg %p121
        %p213 = pneg %p118
        %s214 = sand.u32 %s108, 1
        %s215 = scalar_lea.sflag [#allocation4], %s214
        %s216 = sand.u32 %s108, 1
        %s217 = smul.addr %s216, 8
        %s218 = scalar_lea.vmem [#allocation5], %s217
        %s219 = smul.u32 2, %s25
        %s220 = smul.u32 2, %s25
        %p221 = scmp.lt.s32.totalorder %s24, 1
        %s222 = scalar_select %p221, %s24, 1
        %p223 = scmp.lt.s32.totalorder %s220, 1
        %s224 = scalar_select %p223, %s220, 1
        %s225 = smul.addr %s222, 2
        %s226 = sadd.s32 %s224, %s225
        %s227 = smul.addr %s226, 8
        %s228 = scalar_lea.vmem %s1, %s227
        %s229 = smul.u32 2, %s25
        %s230 = smul.u32 2, %s25
        %v231 = vld [vmem:[%s189] sm:$0xf]
        %v232 = vld [vmem:[%s189 + $0x4] sm:$0xf]
        %v233 = vunpack.c.l.bf16 %v231
        %v234 = vunpack.c.l.bf16 %v232
        %v235 = vmul.f32 %v233, 0.125
        %v236 = vmul.f32 %v234, 0.125
        %v237 = vld [vmem:[%s228] sm:$0xff]
        %v238 = vld [vmem:[%s228 + $0x8] sm:$0xff]
        %vm239 = vcmp.ne.s32.totalorder %v237, 0
        %vm240 = vcmp.ne.s32.totalorder %v238, 0
        %v241 = vsel %vm239, -10000.0, %v235
        %v242 = vsel %vm240, -10000.0, %v236
        %243 = vmax.xlane.f32.xlu0 %v241
        %v244 = vpop.xlane.xlu0 %243
        %245 = vmax.xlane.f32.xlu0 %v242
        %v246 = vpop.xlane.xlu0 %245
        %v247 = vsub.f32 %v241, %v244
        %v248 = vsub.f32 %v242, %v246
        %v249 = vmul.f32 %v247, 1.442695
        %v250 = vpow.pop %v249
        %v251 = vmul.f32 %v248, 1.442695
        %v252 = vpow.pop %v251
        %253 = vadd.xlane.f32.xlu0 %v250
        %v254 = vpop.xlane.xlu0 %253
        %255 = vadd.xlane.f32.xlu0 %v252
        %v256 = vpop.xlane.xlu0 %255
        %v257 = vrcp.pop %v254
        %v258 = vrcp.pop %v256
        %v259 = vmul.f32 %v250, %v257
        %v260 = vmul.f32 %v252, %v258
        %v261 = vpack.c.bf16 %v260, %v259
        %v263 = vunpack.c.l.b16 %v261
        %v264 = vunpack.c.h.b16 %v261
        %v265 = vpack.c.b16 %v263, %v263
        %v266 = vpack.c.b16 %v264, %v264
        %269 = vst [vmem:[%s218] sm:$0xf] %v265
        %270 = vst [vmem:[%s218 + $0x4] sm:$0xf] %v266
        %s271 = sand.u32 %s108, 1
        %s272 = scalar_lea.sflag [#allocation4], %s271
        %s273 = sand.u32 %s108, 1
        %s274 = smul.addr %s273, 8
        %s275 = scalar_lea.vmem [#allocation5], %s274
        // Predicated region
        $region33: #{tpu_custom_call.1} parent=27 // pred_check
          %p276 = pneg %p118
        $region34: #{tpu_custom_call.1} parent=27 // pred_check_branch
          %278 = sbr.rel (%p276) target = $region36
        $region35: #{tpu_custom_call.1} parent=27 // pred_region
          %s279 = smul.u32 2, %s25
          %s281 = ssub.s32 128, 128
          %282 = vsyncadd %s272, %s281
          %s283 = smul.addr %s26, 2
          %s284 = sadd.s32 %s279, %s283
          %s285 = smul.addr %s24, 8
          %s286 = sadd.s32 %s284, %s285
          %s287 = smul.addr %s286, 64
          %s288 = scalar_lea.hbm %s2, %s287
          %s289 = sshll.u32 %s275, 4
          %s290 = int_to_ptr.vmem [resolvable:$true] %s289
          %295 = dma.vmem_to_hbm [thread:$0]  %s290, 128, %s288, %s272, 64, 64, 4
        $region36: #{tpu_custom_call.1} parent=27 // pred_fallthru
          _
      $region28: #{tpu_custom_call.1} parent=5 // pred_fallthru
        _
      %p296 = scmp.le.s32.totalorder 2, %s14
      // Predicated region
      $region37: #{tpu_custom_call.1} parent=5 // pred_check
        %p297 = pneg %p296
      $region38: #{tpu_custom_call.1} parent=5 // pred_check_branch
        %299 = sbr.rel (%p297) target = $region40
      $region39: #{tpu_custom_call.1} parent=5 // pred_region
        %s300 = ssub.s32 %s14, 2
        // Predicated region
        $region41: #{tpu_custom_call.1} parent=39 // pred_check
          %p301 = pneg %p124
        $region42: #{tpu_custom_call.1} parent=39 // pred_check_branch
          %303 = sbr.rel (%p301) target = $region44
        $region43: #{tpu_custom_call.1} parent=39 // pred_region
          %s304 = sand.u32 %s109, 1
          %s305 = scalar_lea.sflag [#allocation4], %s304
          %s306 = sand.u32 %s109, 1
          %s307 = smul.addr %s306, 8
          %s308 = scalar_lea.vmem [#allocation5], %s307
          %309 = dma.done %s305, 128
        $region44: #{tpu_custom_call.1} parent=39 // pred_fallthru
          _
      $region40: #{tpu_custom_call.1} parent=5 // pred_fallthru
        _
    $region6: #{tpu_custom_call.1} parent=1 // loop_footer
      %s18 = sadd.s32 1, %s14
    $region7: #{tpu_custom_call.1} parent=1 // loop_footer_branch
      %13 = sbr.rel target = $region3
    $region8: #{tpu_custom_call.1} parent=1 // loop_exit
      _
    %310 = vsyncpa [#allocation3], 1
    %s311 = scalar_lea.sflag [#allocation3], 1
    %312 = vsyncpa %s311, 1
    %313 = vsyncpa [#allocation4], 1
    %s314 = scalar_lea.sflag [#allocation4], 1
    %315 = vsyncpa %s314, 1

</llo_original>
